<compile_context>
chip_gen: v7x
topology: tpu7x:2x2x1
jax: 0.10.0
libtpu: 0.0.40
codegen_flags: <defaults>
</compile_context>

<pallas_src>
import functools

import jax
import jax.numpy as jnp
from jax.experimental import pallas as pl
from jax.experimental.pallas import tpu as pltpu


_LANE = 128
_SUBLANE = 8
_STAT_ROWS = 8            # sublane-padded rows for the two-phase stats output
_MIN_STEPS = 8            # target >= 8 grid steps (>= 4 per TC on v7x)
_MAX_TILE_UNITS = 8       # cap lane tile at 1024 lanes
_TINY_BYTES = 1 << 20     # below this HBM traffic, pure-JAX/XLA wins
_FALLBACK_VMEM = 64 << 20  # v7x per-TC VMEM (smallest of v5e/v6e/v7x)


def _vmem_capacity_bytes():
    """Physical VMEM of the local TPU; falls back to v7x's 64 MiB."""
    try:
        return int(pltpu.get_tpu_info().vmem_capacity_bytes)
    except Exception:
        return _FALLBACK_VMEM


def _vmem_limit_bytes(vmem_cap):
    # <= 50% of physical VMEM: 32 MiB on v7x, 64 MiB on v5e/v6e.
    return min(max(32 << 20, vmem_cap // 2), vmem_cap)


def _per_block_budget(vmem_cap):
    # f32 bytes for ONE x (or out) block.  With double-buffered input and
    # output blocks ~4x of this is live, i.e. <= 25% of physical VMEM.
    return min(4 << 20, vmem_cap // 16)


def _pick_tile_c(c, max_units):
    """Lane tile: multiple of 128 and never larger than C (full extent if C<128)."""
    if c <= _LANE:
        return c
    full_units = c // _LANE
    return max(1, min(max_units, full_units)) * _LANE


def _choose_tile_c_single(batch, c, vmem_cap):
    """Lane tile for the fused single-pass kernel (full batch per block)."""
    if c <= _LANE:
        return c
    budget = _per_block_budget(vmem_cap)
    units_by_vmem = max(1, budget // (4 * batch * _LANE))
    units_by_steps = max(1, (c // _LANE) // _MIN_STEPS)
    return _pick_tile_c(c, min(_MAX_TILE_UNITS, units_by_vmem, units_by_steps))


# ---------------------------------------------------------------------------
# Kernels
# ---------------------------------------------------------------------------

def _fused_bn_kernel(x_ref, gamma_ref, beta_ref, o_ref, *, eps, batch):
    """Single pass: full batch for one lane tile; fused normalize + affine."""
    x = x_ref[...].astype(jnp.float32)
    inv_b = 1.0 / float(batch)
    mean = jnp.sum(x, axis=0, keepdims=True) * inv_b
    var = jnp.sum(jnp.square(x - mean), axis=0, keepdims=True) * inv_b
    inv_std = jax.lax.rsqrt(var + eps)
    scale = gamma_ref[...].astype(jnp.float32) * inv_std
    shift = beta_ref[...].astype(jnp.float32) - mean * scale
    o_ref[...] = (x * scale + shift).astype(o_ref.dtype)


def _stats_kernel(x_ref, s_ref, *, batch, tile_b):
    """Large-B phase 1: per-column sum (row 0) and sum-of-squares (row 1)."""
    bi = pl.program_id(1)

    @pl.when(bi == 0)
    def _():
        s_ref[...] = jnp.zeros_like(s_ref)

    x = x_ref[...].astype(jnp.float32)
    rows = bi * tile_b + jax.lax.broadcasted_iota(jnp.int32, x.shape, 0)
    x = jnp.where(rows < batch, x, 0.0)  # mask ragged last batch block
    s_ref[0:1, :] = s_ref[0:1, :] + jnp.sum(x, axis=0, keepdims=True)
    s_ref[1:2, :] = s_ref[1:2, :] + jnp.sum(x * x, axis=0, keepdims=True)


def _apply_kernel(x_ref, scale_ref, shift_ref, o_ref):
    """Large-B phase 2: y = x*scale + shift (per-column)."""
    x = x_ref[...].astype(jnp.float32)
    o_ref[...] = (x * scale_ref[...].astype(jnp.float32)
                  + shift_ref[...].astype(jnp.float32)).astype(o_ref.dtype)


# ---------------------------------------------------------------------------
# Wrappers
# ---------------------------------------------------------------------------

def _forward_single_pass(x, gamma2, beta2, eps, out_dtype, vmem_cap):
    B, C = x.shape
    tile_c = _choose_tile_c_single(B, C, vmem_cap)
    grid_c = pl.cdiv(C, tile_c)
    kernel = functools.partial(_fused_bn_kernel, eps=eps, batch=B)
    return pl.pallas_call(
        kernel,
        out_shape=jax.ShapeDtypeStruct((B, C), out_dtype),
        grid_spec=pltpu.PrefetchScalarGridSpec(
            num_scalar_prefetch=0,
            grid=(grid_c,),
            in_specs=[
                pl.BlockSpec((B, tile_c), lambda c: (0, c)),
                pl.BlockSpec((1, tile_c), lambda c: (0, c)),
                pl.BlockSpec((1, tile_c), lambda c: (0, c)),
            ],
            out_specs=pl.BlockSpec((B, tile_c), lambda c: (0, c)),
        ),
        compiler_params=pltpu.CompilerParams(
            dimension_semantics=("parallel",),
            vmem_limit_bytes=_vmem_limit_bytes(vmem_cap),
        ),
    )(x, gamma2, beta2)


def _forward_two_phase(x, gamma, beta, eps, out_dtype, vmem_cap, batch_block):
    B, C = x.shape
    budget = _per_block_budget(vmem_cap)
    tile_c = _pick_tile_c(C, 4)                       # <= 512 lanes
    tile_b = budget // (4 * tile_c)
    if batch_block is not None:
        tile_b = min(tile_b, batch_block)
    tile_b = max(_SUBLANE, (tile_b // _SUBLANE) * _SUBLANE)
    if tile_b >= B:
        tile_b = B                                    # single (full-extent) slab
    grid_b = pl.cdiv(B, tile_b)
    grid_c = pl.cdiv(C, tile_c)
    vmem_limit = _vmem_limit_bytes(vmem_cap)

    # Phase 1: per-column sum / sum-of-squares reduced over batch slabs.
    stats = pl.pallas_call(
        functools.partial(_stats_kernel, batch=B, tile_b=tile_b),
        out_shape=jax.ShapeDtypeStruct((_STAT_ROWS, C), jnp.float32),
        grid_spec=pltpu.PrefetchScalarGridSpec(
            num_scalar_prefetch=0,
            grid=(grid_c, grid_b),
            in_specs=[pl.BlockSpec((tile_b, tile_c), lambda c, b: (b, c))],
            out_specs=pl.BlockSpec((_STAT_ROWS, tile_c), lambda c, b: (0, c)),
        ),
        compiler_params=pltpu.CompilerParams(
            dimension_semantics=("parallel", "arbitrary"),
            vmem_limit_bytes=vmem_limit,
        ),
    )(x)

    # Tiny combine in plain JAX (C-length vectors).
    inv_b = 1.0 / float(B)
    mean = stats[0] * inv_b
    var = jnp.maximum(stats[1] * inv_b - mean * mean, 0.0)
    inv_std = jax.lax.rsqrt(var + eps)
    scale = gamma.astype(jnp.float32) * inv_std
    shift = beta.astype(jnp.float32) - mean * scale
    scale = scale.reshape(1, C)
    shift = shift.reshape(1, C)

    # Phase 2: fused scale/shift over the whole tensor.
    return pl.pallas_call(
        _apply_kernel,
        out_shape=jax.ShapeDtypeStruct((B, C), out_dtype),
        grid_spec=pltpu.PrefetchScalarGridSpec(
            num_scalar_prefetch=0,
            grid=(grid_c, grid_b),
            in_specs=[
                pl.BlockSpec((tile_b, tile_c), lambda c, b: (b, c)),
                pl.BlockSpec((1, tile_c), lambda c, b: (0, c)),
                pl.BlockSpec((1, tile_c), lambda c, b: (0, c)),
            ],
            out_specs=pl.BlockSpec((tile_b, tile_c), lambda c, b: (b, c)),
        ),
        compiler_params=pltpu.CompilerParams(
            dimension_semantics=("parallel", "parallel"),
            vmem_limit_bytes=vmem_limit,
        ),
    )(x, scale, shift)


def phm_norm_forward(x, gamma, beta, *, eps=1e-5, out_dtype=None,
                     use_pallas=None, force_two_phase=False, batch_block=None):
    """x: (B, C) with C = phm_dim*num_features; gamma/beta: (C,).

    use_pallas: None = auto (tiny problems bypass to pure JAX), True/False to
    force.  force_two_phase/batch_block are for the large-batch path (and its
    tests).  Statistics/compute are f32 inside the kernels regardless of
    out_dtype.
    """
    B, C = x.shape
    assert gamma.shape == (C,) and beta.shape == (C,)
    out_dtype = x.dtype if out_dtype is None else jnp.dtype(out_dtype)

    traffic = B * C * (jnp.dtype(x.dtype).itemsize + jnp.dtype(out_dtype).itemsize)
    if use_pallas is False or (use_pallas is None and traffic < _TINY_BYTES):
        # Tiny-problem fast path: Pallas dispatch + per-step overhead dominate
        # at this size and XLA can fuse the reference into neighbouring ops.
        return phm_norm_reference(x, gamma, beta, eps=eps).astype(out_dtype)

    vmem_cap = _vmem_capacity_bytes()
    budget = _per_block_budget(vmem_cap)
    tile_c_min = min(_LANE, C)
    needs_two_phase = force_two_phase or (4 * B * tile_c_min > budget)
    if needs_two_phase:
        return _forward_two_phase(x, gamma, beta, eps, out_dtype, vmem_cap,
                                  batch_block)
    return _forward_single_pass(x, gamma.reshape(1, C), beta.reshape(1, C),
                                eps, out_dtype, vmem_cap)


def phm_norm_reference(x, gamma, beta, *, eps=1e-5):
    xf = x.astype(jnp.float32)
    mean = jnp.mean(xf, axis=0, keepdims=True)
    var = jnp.mean(jnp.square(xf - mean), axis=0, keepdims=True)
    return ((xf - mean) * jax.lax.rsqrt(var + eps)
            * gamma[None, :].astype(jnp.float32)
            + beta[None, :].astype(jnp.float32))


if __name__ == "__main__":
    # Module config: PHMNorm(num_features=32, phm_dim=4, type='naive-batch-norm')
    num_features = 32
    phm_dim = 4
    batch = 8
    eps = 1e-5
    C = phm_dim * num_features

    key = jax.random.PRNGKey(0)
    x = jax.random.normal(key, (batch, C), dtype=jnp.float32)

    # Deterministic init = BatchNorm1d.reset_parameters(): gamma = 1, beta = 0.
    gamma = jnp.ones((phm_dim, num_features), jnp.float32).reshape(C)
    beta = jnp.zeros((phm_dim, num_features), jnp.float32).reshape(C)
    # TODO(synk): running-stat (running_mean/var, momentum) updates are
    # training-time state bookkeeping, not part of the forward output here.

    # Force the Pallas single-pass kernel even at this tiny size (the default
    # policy would bypass to pure JAX below ~1 MiB of traffic).
    out = phm_norm_forward(x, gamma, beta, eps=eps, use_pallas=True)
    out = jax.block_until_ready(out)
    ref = phm_norm_reference(x, gamma, beta, eps=eps)
    assert out.shape == (batch, C)
    assert jnp.allclose(out, ref, atol=1e-5, rtol=1e-5), "single-pass mismatch"

    # Exercise the large-batch two-phase path (forced, small shapes): a
    # PHMNorm(num_features=112, phm_dim=4) config with ragged batch/lane tiles.
    B2, C2 = 40, 4 * 112   # C2 = 448 -> ragged last lane block; B2 % 8 != 0
    x2 = jax.random.normal(jax.random.PRNGKey(0), (B2, C2), dtype=jnp.float32)
    g2 = jax.random.normal(jax.random.PRNGKey(1), (C2,), dtype=jnp.float32)
    b2 = jax.random.normal(jax.random.PRNGKey(2), (C2,), dtype=jnp.float32)
    out2 = phm_norm_forward(x2, g2, b2, eps=eps, use_pallas=True,
                            force_two_phase=True, batch_block=16)
    out2 = jax.block_until_ready(out2)
    ref2 = phm_norm_reference(x2, g2, b2, eps=eps)
    assert out2.shape == (B2, C2)
    assert jnp.allclose(out2, ref2, atol=1e-4, rtol=1e-4), "two-phase mismatch"

    print("KERNEL_OK")
</pallas_src>

<mosaic_0001>
module attributes {stable_mosaic.version = 11 : i64} {
  func.func @_fused_bn_kernel(%arg0: i32, %arg1: memref<8x128xf32, #tpu.memory_space<vmem>>, %arg2: memref<1x128xf32, #tpu.memory_space<vmem>>, %arg3: memref<1x128xf32, #tpu.memory_space<vmem>>, %arg4: memref<8x128xf32, #tpu.memory_space<vmem>>) attributes {dimension_semantics = [#tpu.dimension_semantics<parallel>], iteration_bounds = array<i64: 1>, scalar_prefetch = 0 : i64, scratch_operands = 0 : i64, tpu.core_type = #tpu.core_type<tc>, window_params = [{transform_indices = @transform_0, window_bounds = array<i64: 8, 128>}, {transform_indices = @transform_1, window_bounds = array<i64: 1, 128>}, {transform_indices = @transform_2, window_bounds = array<i64: 1, 128>}, {transform_indices = @transform_3, window_bounds = array<i64: 8, 128>}]} {
    %c0 = arith.constant 0 : index
    %c0_0 = arith.constant 0 : index
    %0 = vector.load %arg1[%c0, %c0_0] : memref<8x128xf32, #tpu.memory_space<vmem>>, vector<8x128xf32>
    %cst = arith.constant dense<0.000000e+00> : vector<128xf32>
    %1 = vector.multi_reduction <add>, %0, %cst [0] : vector<8x128xf32> to vector<128xf32>
    %2 = vector.shape_cast %1 : vector<128xf32> to vector<1x128xf32>
    %cst_1 = arith.constant 1.250000e-01 : f32
    %3 = vector.broadcast %cst_1 : f32 to vector<1x128xf32>
    %4 = arith.mulf %2, %3 : vector<1x128xf32>
    %5 = vector.broadcast %4 : vector<1x128xf32> to vector<8x128xf32>
    %6 = arith.subf %0, %5 : vector<8x128xf32>
    %7 = arith.mulf %6, %6 : vector<8x128xf32>
    %cst_2 = arith.constant dense<0.000000e+00> : vector<128xf32>
    %8 = vector.multi_reduction <add>, %7, %cst_2 [0] : vector<8x128xf32> to vector<128xf32>
    %9 = vector.shape_cast %8 : vector<128xf32> to vector<1x128xf32>
    %cst_3 = arith.constant 1.250000e-01 : f32
    %10 = vector.broadcast %cst_3 : f32 to vector<1x128xf32>
    %11 = arith.mulf %9, %10 : vector<1x128xf32>
    %cst_4 = arith.constant 9.99999974E-6 : f32
    %12 = vector.broadcast %cst_4 : f32 to vector<1x128xf32>
    %13 = arith.addf %11, %12 : vector<1x128xf32>
    %14 = math.rsqrt %13 : vector<1x128xf32>
    %c0_5 = arith.constant 0 : index
    %c0_6 = arith.constant 0 : index
    %15 = vector.load %arg2[%c0_5, %c0_6] : memref<1x128xf32, #tpu.memory_space<vmem>>, vector<1x128xf32>
    %16 = arith.mulf %15, %14 : vector<1x128xf32>
    %c0_7 = arith.constant 0 : index
    %c0_8 = arith.constant 0 : index
    %17 = vector.load %arg3[%c0_7, %c0_8] : memref<1x128xf32, #tpu.memory_space<vmem>>, vector<1x128xf32>
    %18 = arith.mulf %4, %16 : vector<1x128xf32>
    %19 = arith.subf %17, %18 : vector<1x128xf32>
    %20 = vector.broadcast %16 : vector<1x128xf32> to vector<8x128xf32>
    %21 = arith.mulf %0, %20 : vector<8x128xf32>
    %22 = vector.broadcast %19 : vector<1x128xf32> to vector<8x128xf32>
    %23 = arith.addf %21, %22 : vector<8x128xf32>
    %c0_9 = arith.constant 0 : index
    %c0_10 = arith.constant 0 : index
    %24 = vector.load %arg4[%c0_9, %c0_10] : memref<8x128xf32, #tpu.memory_space<vmem>>, vector<8x128xf32>
    tpu.vector_store %arg4[%c0_9, %c0_10], %23 {strides = array<i32>} : memref<8x128xf32, #tpu.memory_space<vmem>>, vector<8x128xf32>,
    return
  }
  func.func @transform_0(%arg0: i32) -> (i32, i32) {
    %c0_i32 = arith.constant 0 : i32
    %c0_i32_0 = arith.constant 0 : i32
    return %c0_i32, %arg0 : i32, i32
  }
  func.func @transform_1(%arg0: i32) -> (i32, i32) {
    %c0_i32 = arith.constant 0 : i32
    %c0_i32_0 = arith.constant 0 : i32
    return %c0_i32, %arg0 : i32, i32
  }
  func.func @transform_2(%arg0: i32) -> (i32, i32) {
    %c0_i32 = arith.constant 0 : i32
    %c0_i32_0 = arith.constant 0 : i32
    return %c0_i32, %arg0 : i32, i32
  }
  func.func @transform_3(%arg0: i32) -> (i32, i32) {
    %c0_i32 = arith.constant 0 : i32
    %c0_i32_0 = arith.constant 0 : i32
    return %c0_i32, %arg0 : i32, i32
  }
}

</mosaic_0001>

<llo_original>
// kernel: tpu_custom_call.1
$region0: #{tpu_custom_call.1}
  #allocation0 [shape = 'u32[]', space=smem, size = 0x4, offset = 0x4, fixed_abs, tag = 'smem constant byte address 0x4 - core index']
  #allocation1 [shape = 'u32[144,128]{1,0:T(1,128)}', space=vmem, size = 0x12000, scoped, tag = 'internal scratch']
  %s0 = inlined_call_operand.hbm [shape: f32[8,128], index: 0, kind: input, shape index: {}]
  %s1 = inlined_call_operand.vmem [shape: f32[1,128], index: 1, kind: input, shape index: {}]
  %s2 = inlined_call_operand.vmem [shape: f32[1,128], index: 2, kind: input, shape index: {}]
  %s3 = inlined_call_operand.hbm [shape: f32[8,128], index: 3, kind: output, shape index: {}]
  %s4 = sld [smem:[#allocation0]]
  $region26: #{tpu_custom_call.1} parent=0
    _
  %s6 = ssub.s32 1, %s4
  %s7 = scalar_select 0, %s6, %s4
  $region1: #{tpu_custom_call.1} parent=0
    #allocation2 [shape = 'u8[4096]{0}', space=vmem, size = 0x1000, scoped, tag = 'input window, operand 0, single buffered']
    #allocation3 [shape = 's32[1]{0}', space=sflag, size = 0x4, scoped, tag = 'scoped memory for tpu_custom_call.1']
    #allocation4 [shape = 's32[1]{0}', space=sflag, size = 0x4, scoped, tag = 'scoped memory for tpu_custom_call.1']
    #allocation5 [shape = 'u8[4096]{0}', space=vmem, size = 0x1000, scoped, tag = 'output window, operand 0, single buffered']
    %8 = vsyncpa [#allocation3], 0
    %9 = vsyncpa [#allocation4], 0
    // Predicated region
    $region2: #{tpu_custom_call.1} parent=1 // pred_check
      _
    $region3: #{tpu_custom_call.1} parent=1 // pred_check_branch
      %11 = sbr.rel (0) target = $region5
    $region4: #{tpu_custom_call.1} parent=1 // pred_region
      %s13 = ssub.s32 128, 128
      %14 = vsyncadd [#allocation3], %s13
      %s16 = sshll.u32 [#allocation2], 4
      %s17 = int_to_ptr.vmem [resolvable:$true] %s16
      %19 = dma.hbm_to_vmem [thread:$0]  %s0, 128, %s17, [#allocation3]
    $region5: #{tpu_custom_call.1} parent=1 // pred_fallthru
      _
    // Predicated region
    $region6: #{tpu_custom_call.1} parent=1 // pred_check
      _
    $region7: #{tpu_custom_call.1} parent=1 // pred_check_branch
      %21 = sbr.rel (0) target = $region9
    $region8: #{tpu_custom_call.1} parent=1 // pred_region
      _
    $region9: #{tpu_custom_call.1} parent=1 // pred_fallthru
      _
    // Predicated region
    $region10: #{tpu_custom_call.1} parent=1 // pred_check
      _
    $region11: #{tpu_custom_call.1} parent=1 // pred_check_branch
      %23 = sbr.rel (0) target = $region13
    $region12: #{tpu_custom_call.1} parent=1 // pred_region
      _
    $region13: #{tpu_custom_call.1} parent=1 // pred_fallthru
      _
    // Predicated region
    $region14: #{tpu_custom_call.1} parent=1 // pred_check
      _
    $region15: #{tpu_custom_call.1} parent=1 // pred_check_branch
      %25 = sbr.rel (0) target = $region17
    $region16: #{tpu_custom_call.1} parent=1 // pred_region
      %26 = dma.done [#allocation3], 128
    $region17: #{tpu_custom_call.1} parent=1 // pred_fallthru
      _
    %v27 = vld [vmem:[#allocation2] sm:$0xff]
    %v28 = vrot.slane %v27, 4
    %v29 = vadd.f32 %v27, %v28
    %v30 = vrot.slane %v29, 2
    %v31 = vadd.f32 %v29, %v30
    %v32 = vrot.slane %v31, 1
    %v33 = vadd.f32 %v31, %v32
    %v34 = vmul.f32 %v33, 0.125
    %v35 = vsub.f32 %v27, %v34
    %v36 = vmul.f32 %v35, %v35
    %v37 = vrot.slane %v36, 4
    %v38 = vadd.f32 %v36, %v37
    %v39 = vrot.slane %v38, 2
    %v40 = vadd.f32 %v38, %v39
    %v41 = vrot.slane %v40, 1
    %v42 = vadd.f32 %v40, %v41
    %v43 = vmul.f32 %v42, 0.125
    %v44 = vadd.f32 %v43, 1e-05
    %v45 = vrsqrt.pop %v44
    %v46 = vld [vmem:[%s1] sm:$0x1]
    %v47 = vmul.f32 %v46, %v45
    %v48 = vld [vmem:[%s2] sm:$0x1]
    %v49 = vmul.f32 %v34, %v47
    %v50 = vsub.f32 %v48, %v49
    %v52 = vlaneseq
    %v53 = vshrl.u32 %v52, 7
    %v54 = vsub.s32 0, %v53
    %v55 = vrot.slane %v47, %v54
    %v57 = vmul.f32 %v27, %v55
    %v59 = vlaneseq
    %v60 = vshrl.u32 %v59, 7
    %v61 = vsub.s32 0, %v60
    %v62 = vrot.slane %v50, %v61
    %v64 = vadd.f32 %v57, %v62
    %65 = vst [vmem:[#allocation5] sm:$0xff] %v64
    // Predicated region
    $region18: #{tpu_custom_call.1} parent=1 // pred_check
      _
    $region19: #{tpu_custom_call.1} parent=1 // pred_check_branch
      %67 = sbr.rel (0) target = $region21
    $region20: #{tpu_custom_call.1} parent=1 // pred_region
      %s69 = ssub.s32 128, 128
      %70 = vsyncadd [#allocation4], %s69
      %s72 = sshll.u32 [#allocation5], 4
      %s73 = int_to_ptr.vmem [resolvable:$true] %s72
      %75 = dma.vmem_to_hbm [thread:$0]  %s73, 128, %s3, [#allocation4]
    $region21: #{tpu_custom_call.1} parent=1 // pred_fallthru
      _
    // Predicated region
    $region22: #{tpu_custom_call.1} parent=1 // pred_check
      _
    $region23: #{tpu_custom_call.1} parent=1 // pred_check_branch
      %77 = sbr.rel (0) target = $region25
    $region24: #{tpu_custom_call.1} parent=1 // pred_region
      %78 = dma.done [#allocation4], 128
    $region25: #{tpu_custom_call.1} parent=1 // pred_fallthru
      _
    %79 = vsyncpa [#allocation3], 1
    %80 = vsyncpa [#allocation4], 1

</llo_original>
